<compile_context>
chip_gen: v5e
topology: v5e:2x2
jax: 0.10.0
libtpu: 0.0.40
codegen_flags: <defaults>
</compile_context>

<pallas_src>
import functools

import jax
import jax.numpy as jnp
from jax.experimental import pallas as pl
from jax.experimental.pallas import tpu as pltpu


def _mlp_kernel(x_ref, w1_ref, b1_ref, w2_ref, b2_ref, o_ref):
    """Fused 2-layer MLP with tanh activations for one batch tile."""
    x = x_ref[...]
    # Layer 1: [tb, S] @ [S, H1]  (bf16 operands, f32 accumulate) -> +b1 -> tanh
    h = jnp.dot(x.astype(jnp.bfloat16), w1_ref[...],
                preferred_element_type=jnp.float32)
    h = jnp.tanh(h + b1_ref[...])
    # Layer 2: [tb, H1] @ [H1, H2] (bf16 operands, f32 accumulate) -> +b2 -> tanh
    y = jnp.dot(h.astype(jnp.bfloat16), w2_ref[...],
                preferred_element_type=jnp.float32)
    o_ref[...] = jnp.tanh(y + b2_ref[...]).astype(o_ref.dtype)


def _round_up(n, m):
    return (n + m - 1) // m * m


@functools.partial(jax.jit, static_argnames=("max_tile_b",))
def feature_extractor_forward(x, w1, b1, w2, b2, *, max_tile_b=1024):
    """x: [B, state_size]; w1: [state_size, H1]; b1: [1, H1];
       w2: [H1, H2]; b2: [1, H2]  ->  [B, H2] (same dtype as x)."""
    B, S = x.shape
    H1 = w1.shape[1]
    H2 = w2.shape[1]

    # One big batch tile per grid step, rounded up to a multiple of 8 sublanes
    # so every store is a full (unmasked) vst.  Small batches run as a single
    # step; large batches use up-to-1024-row tiles (multiple of 128 and 256 ->
    # full MXU M occupancy on v5e/v6e/v7x) while the working set stays far
    # below the scoped-VMEM limit (weights ~0.3 MiB bf16, h intermediate
    # ~2 MiB f32 at tb=1024).
    max_tile_b = _round_up(max_tile_b, 8)
    tile_b = min(_round_up(B, 8), max_tile_b)
    num_steps = (B + tile_b - 1) // tile_b
    B_pad = num_steps * tile_b
    if B_pad != B:
        x = jnp.pad(x, ((0, B_pad - B), (0, 0)))

    # bf16 weights: native MXU dtype on every generation, half the residency.
    w1_bf = w1.astype(jnp.bfloat16)
    w2_bf = w2.astype(jnp.bfloat16)
    b1_f32 = b1.astype(jnp.float32)
    b2_f32 = b2.astype(jnp.float32)

    dim_sem = ("parallel",) if num_steps > 1 else ("arbitrary",)

    out = pl.pallas_call(
        _mlp_kernel,
        out_shape=jax.ShapeDtypeStruct((B_pad, H2), x.dtype),
        grid_spec=pl.GridSpec(
            grid=(num_steps,),
            in_specs=[
                pl.BlockSpec((tile_b, S), lambda i: (i, 0)),   # x tile
                pl.BlockSpec((S, H1), lambda i: (0, 0)),       # W1 (resident, bf16)
                pl.BlockSpec((1, H1), lambda i: (0, 0)),       # b1 (f32)
                pl.BlockSpec((H1, H2), lambda i: (0, 0)),      # W2 (resident, bf16)
                pl.BlockSpec((1, H2), lambda i: (0, 0)),       # b2 (f32)
            ],
            out_specs=pl.BlockSpec((tile_b, H2), lambda i: (i, 0)),
        ),
        compiler_params=pltpu.CompilerParams(dimension_semantics=dim_sem),
    )(x, w1_bf, b1_f32, w2_bf, b2_f32)

    return out[:B] if B_pad != B else out


def init_params(key, state_size, hidsize1=512, hidsize2=256, dtype=jnp.float32):
    """Deterministic PyTorch-style (uniform +-1/sqrt(fan_in)) init.
    Weights returned already transposed to [in, out]."""
    k1, k2, k3, k4 = jax.random.split(key, 4)
    bound1 = 1.0 / jnp.sqrt(state_size)
    bound2 = 1.0 / jnp.sqrt(hidsize1)
    w1 = jax.random.uniform(k1, (state_size, hidsize1), dtype, -bound1, bound1)
    b1 = jax.random.uniform(k2, (1, hidsize1), dtype, -bound1, bound1)
    w2 = jax.random.uniform(k3, (hidsize1, hidsize2), dtype, -bound2, bound2)
    b2 = jax.random.uniform(k4, (1, hidsize2), dtype, -bound2, bound2)
    return w1, b1, w2, b2


def _ref_bf16(x, w1, b1, w2, b2):
    """Reference matching the kernel's precision (bf16 matmul, f32 accumulate)."""
    h = jnp.dot(x.astype(jnp.bfloat16), w1.astype(jnp.bfloat16),
                preferred_element_type=jnp.float32) + b1
    h = jnp.tanh(h)
    y = jnp.dot(h.astype(jnp.bfloat16), w2.astype(jnp.bfloat16),
                preferred_element_type=jnp.float32) + b2
    return jnp.tanh(y)


if __name__ == "__main__":
    key = jax.random.PRNGKey(0)
    k_params, k_x = jax.random.split(key)

    batch = 16
    state_size = 32
    hidsize1, hidsize2 = 512, 256

    w1, b1, w2, b2 = init_params(k_params, state_size, hidsize1, hidsize2)
    x = jax.random.normal(k_x, (batch, state_size), jnp.float32)

    # Single-step path (B <= max tile).
    out = feature_extractor_forward(x, w1, b1, w2, b2)
    out = jax.block_until_ready(out)
    assert out.shape == (batch, hidsize2)
    assert out.dtype == x.dtype

    # Precision-matched reference (bf16 matmuls, f32 accumulate).
    ref = _ref_bf16(x, w1, b1, w2, b2)
    assert jnp.allclose(out, ref, atol=1e-4, rtol=1e-4), "mismatch vs bf16 reference"

    # Loose semantic check against the full-f32 PyTorch-equivalent forward.
    ref_f32 = jnp.tanh(jnp.tanh(x @ w1 + b1) @ w2 + b2)
    assert jnp.allclose(out, ref_f32, atol=2e-2, rtol=2e-2), "mismatch vs f32 reference"

    # Exercise the multi-step + ragged-batch (padding) path.
    x2 = jax.random.normal(jax.random.PRNGKey(1), (20, state_size), jnp.float32)
    out2 = feature_extractor_forward(x2, w1, b1, w2, b2, max_tile_b=8)
    out2 = jax.block_until_ready(out2)
    assert out2.shape == (20, hidsize2)
    ref2 = _ref_bf16(x2, w1, b1, w2, b2)
    assert jnp.allclose(out2, ref2, atol=1e-4, rtol=1e-4), "mismatch (padded path)"

    # Exercise a tiny, non-multiple-of-8 batch (sublane padding path).
    x3 = jax.random.normal(jax.random.PRNGKey(2), (3, state_size), jnp.float32)
    out3 = jax.block_until_ready(feature_extractor_forward(x3, w1, b1, w2, b2))
    assert out3.shape == (3, hidsize2)
    ref3 = _ref_bf16(x3, w1, b1, w2, b2)
    assert jnp.allclose(out3, ref3, atol=1e-4, rtol=1e-4), "mismatch (tiny batch)"

    # TODO(synk): save()/load() checkpoint I/O from the PyTorch module is host-side
    # file handling, not a forward-pass op; intentionally not ported.
    print("KERNEL_OK")
</pallas_src>

<mosaic_0001>
module attributes {stable_mosaic.version = 11 : i64} {
  func.func @_mlp_kernel(%arg0: i32, %arg1: memref<16x32xf32, #tpu.memory_space<vmem>>, %arg2: memref<32x512xbf16, #tpu.memory_space<vmem>>, %arg3: memref<1x512xf32, #tpu.memory_space<vmem>>, %arg4: memref<512x256xbf16, #tpu.memory_space<vmem>>, %arg5: memref<1x256xf32, #tpu.memory_space<vmem>>, %arg6: memref<16x256xf32, #tpu.memory_space<vmem>>) attributes {dimension_semantics = [#tpu.dimension_semantics<arbitrary>], iteration_bounds = array<i64: 1>, scalar_prefetch = 0 : i64, scratch_operands = 0 : i64, tpu.core_type = #tpu.core_type<tc>, window_params = [{transform_indices = @transform_0, window_bounds = array<i64: 16, 32>}, {pipeline_mode = #tpu.pipeline_mode<synchronous>, transform_indices = @transform_1, window_bounds = array<i64: 32, 512>}, {pipeline_mode = #tpu.pipeline_mode<synchronous>, transform_indices = @transform_2, window_bounds = array<i64: 1, 512>}, {pipeline_mode = #tpu.pipeline_mode<synchronous>, transform_indices = @transform_3, window_bounds = array<i64: 512, 256>}, {pipeline_mode = #tpu.pipeline_mode<synchronous>, transform_indices = @transform_4, window_bounds = array<i64: 1, 256>}, {transform_indices = @transform_5, window_bounds = array<i64: 16, 256>}]} {
    %c0 = arith.constant 0 : index
    %c0_0 = arith.constant 0 : index
    %0 = vector.load %arg1[%c0, %c0_0] : memref<16x32xf32, #tpu.memory_space<vmem>>, vector<16x32xf32>
    %1 = arith.truncf %0 : vector<16x32xf32> to vector<16x32xbf16>
    %c0_1 = arith.constant 0 : index
    %c0_2 = arith.constant 0 : index
    %2 = vector.load %arg2[%c0_1, %c0_2] : memref<32x512xbf16, #tpu.memory_space<vmem>>, vector<32x512xbf16>
    %cst = arith.constant dense<0.000000e+00> : vector<16x512xf32>
    %3 = tpu.matmul %1, %2, %cst {dimension_numbers = #tpu.dot_dimension_numbers<[1], [0], [0], [1], [0, 0, 1, 1], [], []>} : vector<16x32xbf16>, vector<32x512xbf16>, vector<16x512xf32> -> vector<16x512xf32>
    %c0_3 = arith.constant 0 : index
    %c0_4 = arith.constant 0 : index
    %4 = vector.load %arg3[%c0_3, %c0_4] : memref<1x512xf32, #tpu.memory_space<vmem>>, vector<1x512xf32>
    %5 = vector.broadcast %4 : vector<1x512xf32> to vector<16x512xf32>
    %6 = arith.addf %3, %5 : vector<16x512xf32>
    %7 = math.tanh %6 : vector<16x512xf32>
    %8 = arith.truncf %7 : vector<16x512xf32> to vector<16x512xbf16>
    %c0_5 = arith.constant 0 : index
    %c0_6 = arith.constant 0 : index
    %9 = vector.load %arg4[%c0_5, %c0_6] : memref<512x256xbf16, #tpu.memory_space<vmem>>, vector<512x256xbf16>
    %cst_7 = arith.constant dense<0.000000e+00> : vector<16x256xf32>
    %10 = tpu.matmul %8, %9, %cst_7 {dimension_numbers = #tpu.dot_dimension_numbers<[1], [0], [0], [1], [0, 0, 1, 1], [], []>} : vector<16x512xbf16>, vector<512x256xbf16>, vector<16x256xf32> -> vector<16x256xf32>
    %c0_8 = arith.constant 0 : index
    %c0_9 = arith.constant 0 : index
    %11 = vector.load %arg5[%c0_8, %c0_9] : memref<1x256xf32, #tpu.memory_space<vmem>>, vector<1x256xf32>
    %12 = vector.broadcast %11 : vector<1x256xf32> to vector<16x256xf32>
    %13 = arith.addf %10, %12 : vector<16x256xf32>
    %14 = math.tanh %13 : vector<16x256xf32>
    %c0_10 = arith.constant 0 : index
    %c0_11 = arith.constant 0 : index
    %15 = vector.load %arg6[%c0_10, %c0_11] : memref<16x256xf32, #tpu.memory_space<vmem>>, vector<16x256xf32>
    tpu.vector_store %arg6[%c0_10, %c0_11], %14 {strides = array<i32>} : memref<16x256xf32, #tpu.memory_space<vmem>>, vector<16x256xf32>,
    return
  }
  func.func @transform_0(%arg0: i32) -> (i32, i32) {
    %c0_i32 = arith.constant 0 : i32
    %c0_i32_0 = arith.constant 0 : i32
    return %arg0, %c0_i32 : i32, i32
  }
  func.func @transform_1(%arg0: i32) -> (i32, i32) {
    %c0_i32 = arith.constant 0 : i32
    %c0_i32_0 = arith.constant 0 : i32
    %c0_i32_1 = arith.constant 0 : i32
    return %c0_i32, %c0_i32_0 : i32, i32
  }
  func.func @transform_2(%arg0: i32) -> (i32, i32) {
    %c0_i32 = arith.constant 0 : i32
    %c0_i32_0 = arith.constant 0 : i32
    %c0_i32_1 = arith.constant 0 : i32
    return %c0_i32, %c0_i32_0 : i32, i32
  }
  func.func @transform_3(%arg0: i32) -> (i32, i32) {
    %c0_i32 = arith.constant 0 : i32
    %c0_i32_0 = arith.constant 0 : i32
    %c0_i32_1 = arith.constant 0 : i32
    return %c0_i32, %c0_i32_0 : i32, i32
  }
  func.func @transform_4(%arg0: i32) -> (i32, i32) {
    %c0_i32 = arith.constant 0 : i32
    %c0_i32_0 = arith.constant 0 : i32
    %c0_i32_1 = arith.constant 0 : i32
    return %c0_i32, %c0_i32_0 : i32, i32
  }
  func.func @transform_5(%arg0: i32) -> (i32, i32) {
    %c0_i32 = arith.constant 0 : i32
    %c0_i32_0 = arith.constant 0 : i32
    return %arg0, %c0_i32 : i32, i32
  }
}

</mosaic_0001>

<llo_original>
// kernel: feature_extractor_forward.1
$region0: #{feature_extractor_forward.1}
  #allocation0 [shape = 'u32[]', space=smem, size = 0x4, offset = 0x4, fixed_abs, tag = 'smem constant byte address 0x4 - core index']
  #allocation1 [shape = 'u32[72,128]{1,0:T(1,128)}', space=vmem, size = 0x9000, scoped, tag = 'internal scratch']
  %s0 = inlined_call_operand.vmem [shape: f32[16,32], index: 0, kind: input, shape index: {}]
  %s1 = inlined_call_operand.vmem [shape: bf16[32,512], index: 1, kind: input, shape index: {}]
  %s2 = inlined_call_operand.vmem [shape: f32[1,512], index: 2, kind: input, shape index: {}]
  %s3 = inlined_call_operand.vmem [shape: bf16[512,256], index: 3, kind: input, shape index: {}]
  %s4 = inlined_call_operand.vmem [shape: f32[1,256], index: 4, kind: input, shape index: {}]
  %s5 = inlined_call_operand.hbm [shape: f32[16,256], index: 5, kind: output, shape index: {}]
  %s6 = sld [smem:[#allocation0]]
  $region30: #{feature_extractor_forward.1} parent=0
    _
  %s8 = ssub.s32 1, %s6
  %s9 = scalar_select 0, %s8, %s6
  $region1: #{feature_extractor_forward.1} parent=0
    #allocation2 [shape = 'u8[16384]{0}', space=vmem, size = 0x4000, scoped, tag = 'output window, operand 0, single buffered']
    #allocation3 [shape = 's32[1]{0}', space=sflag, size = 0x4, scoped, tag = 'scoped memory for feature_extractor_forward.1']
    %10 = vsyncpa [#allocation3], 0
    // Predicated region
    $region2: #{feature_extractor_forward.1} parent=1 // pred_check
      _
    $region3: #{feature_extractor_forward.1} parent=1 // pred_check_branch
      %12 = sbr.rel (0) target = $region5
    $region4: #{feature_extractor_forward.1} parent=1 // pred_region
      _
    $region5: #{feature_extractor_forward.1} parent=1 // pred_fallthru
      _
    // Predicated region
    $region6: #{feature_extractor_forward.1} parent=1 // pred_check
      _
    $region7: #{feature_extractor_forward.1} parent=1 // pred_check_branch
      %14 = sbr.rel (0) target = $region9
    $region8: #{feature_extractor_forward.1} parent=1 // pred_region
      _
    $region9: #{feature_extractor_forward.1} parent=1 // pred_fallthru
      _
    // Predicated region
    $region10: #{feature_extractor_forward.1} parent=1 // pred_check
      _
    $region11: #{feature_extractor_forward.1} parent=1 // pred_check_branch
      %16 = sbr.rel (0) target = $region13
    $region12: #{feature_extractor_forward.1} parent=1 // pred_region
      _
    $region13: #{feature_extractor_forward.1} parent=1 // pred_fallthru
      _
    // Predicated region
    $region14: #{feature_extractor_forward.1} parent=1 // pred_check
      _
    $region15: #{feature_extractor_forward.1} parent=1 // pred_check_branch
      %18 = sbr.rel (0) target = $region17
    $region16: #{feature_extractor_forward.1} parent=1 // pred_region
      _
    $region17: #{feature_extractor_forward.1} parent=1 // pred_fallthru
      _
    // Predicated region
    $region18: #{feature_extractor_forward.1} parent=1 // pred_check
      _
    $region19: #{feature_extractor_forward.1} parent=1 // pred_check_branch
      %20 = sbr.rel (0) target = $region21
    $region20: #{feature_extractor_forward.1} parent=1 // pred_region
      _
    $region21: #{feature_extractor_forward.1} parent=1 // pred_fallthru
      _
    %v22 = vld [vmem:[%s0] sm:$0xff]
    %v23 = vld [vmem:[%s0 + $0x8] sm:$0xff]
    %v24 = vpack.c.bf16 %v23, %v22
    %v25 = vld [vmem:[%s1] sm:$0xff]
    %v26 = vld [vmem:[%s1 + $0x8] sm:$0xff]
    %v27 = vld [vmem:[%s1 + $0x10] sm:$0xff]
    %v28 = vld [vmem:[%s1 + $0x18] sm:$0xff]
    %v29 = vld [vmem:[%s1 + $0x20] sm:$0xff]
    %v30 = vld [vmem:[%s1 + $0x28] sm:$0xff]
    %v31 = vld [vmem:[%s1 + $0x30] sm:$0xff]
    %v32 = vld [vmem:[%s1 + $0x38] sm:$0xff]
    %v33 = vld [vmem:[%s2] sm:$0xf]
    %v35 = vperm.slane %v33, 0
    %v36 = vperm.slane %v33, 1
    %v37 = vperm.slane %v33, 2
    %v38 = vperm.slane %v33, 3
    %v51 = vunpack.c.l.b16 %v25
    %v52 = vunpack.c.h.b16 %v25
    %v53 = vunpack.c.l.b16 %v26
    %v54 = vunpack.c.h.b16 %v26
    %v55 = vunpack.c.l.b16 %v27
    %v56 = vunpack.c.h.b16 %v27
    %v57 = vunpack.c.l.b16 %v28
    %v58 = vunpack.c.h.b16 %v28
    %v59 = vunpack.c.l.b16 %v29
    %v60 = vunpack.c.h.b16 %v29
    %v61 = vunpack.c.l.b16 %v30
    %v62 = vunpack.c.h.b16 %v30
    %v63 = vunpack.c.l.b16 %v31
    %v64 = vunpack.c.h.b16 %v31
    %v65 = vunpack.c.l.b16 %v32
    %v66 = vunpack.c.h.b16 %v32
    %v67 = vpack.c.b16 %v55, %v51
    %v68 = vpack.c.b16 %v56, %v52
    %v69 = vpack.c.b16 %v57, %v53
    %v70 = vpack.c.b16 %v58, %v54
    %v71 = vpack.c.b16 %v63, %v59
    %v72 = vpack.c.b16 %v64, %v60
    %v73 = vpack.c.b16 %v65, %v61
    %v74 = vpack.c.b16 %v66, %v62
    %vm83 = vcmask 261120
    %v85 = vsel %vm83, %v24, 0
    %87 = vmatpush.bf16.msra.mxu0 0
    %88 = vmatpush.bf16.msra.mxu0 0
    %89 = vmatpush.bf16.msra.mxu0 0
    %90 = vmatpush.bf16.msra.mxu0 0
    %91 = vmatpush.bf16.msra.mxu0 0
    %92 = vmatpush.bf16.msra.mxu0 0
    %93 = vmatpush.bf16.msra.mxu0 %v71
    %94 = vmatpush.bf16.msra.mxu0 %v67
    %95 = vmatmul.bf16.gmra.mxu0 %v85
    %v96 = vpop.f32.mrf.mxu0
    %v97 = vadd.f32 %v35, %v96
    %v98 = vpop.f32.mrf.mxu0
    %v99 = vadd.f32 %v35, %v98
    %100 = vdwg.mxu0
    %101 = vmatpush.bf16.msra.mxu0 0
    %102 = vmatpush.bf16.msra.mxu0 0
    %103 = vmatpush.bf16.msra.mxu0 0
    %104 = vmatpush.bf16.msra.mxu0 0
    %105 = vmatpush.bf16.msra.mxu0 0
    %106 = vmatpush.bf16.msra.mxu0 0
    %107 = vmatpush.bf16.msra.mxu0 %v72
    %108 = vmatpush.bf16.msra.mxu0 %v68
    %109 = vmatmul.bf16.gmra.mxu0 %v85
    %v110 = vpop.f32.mrf.mxu0
    %v111 = vadd.f32 %v36, %v110
    %v112 = vpop.f32.mrf.mxu0
    %v113 = vadd.f32 %v36, %v112
    %114 = vdwg.mxu0
    %115 = vmatpush.bf16.msra.mxu0 0
    %116 = vmatpush.bf16.msra.mxu0 0
    %117 = vmatpush.bf16.msra.mxu0 0
    %118 = vmatpush.bf16.msra.mxu0 0
    %119 = vmatpush.bf16.msra.mxu0 0
    %120 = vmatpush.bf16.msra.mxu0 0
    %121 = vmatpush.bf16.msra.mxu0 %v73
    %122 = vmatpush.bf16.msra.mxu0 %v69
    %123 = vmatmul.bf16.gmra.mxu0 %v85
    %v124 = vpop.f32.mrf.mxu0
    %v125 = vadd.f32 %v37, %v124
    %v126 = vpop.f32.mrf.mxu0
    %v127 = vadd.f32 %v37, %v126
    %128 = vdwg.mxu0
    %129 = vmatpush.bf16.msra.mxu0 0
    %130 = vmatpush.bf16.msra.mxu0 0
    %131 = vmatpush.bf16.msra.mxu0 0
    %132 = vmatpush.bf16.msra.mxu0 0
    %133 = vmatpush.bf16.msra.mxu0 0
    %134 = vmatpush.bf16.msra.mxu0 0
    %135 = vmatpush.bf16.msra.mxu0 %v74
    %136 = vmatpush.bf16.msra.mxu0 %v70
    %137 = vmatmul.bf16.gmra.mxu0 %v85
    %v138 = vpop.f32.mrf.mxu0
    %v139 = vadd.f32 %v38, %v138
    %v140 = vpop.f32.mrf.mxu0
    %v141 = vadd.f32 %v38, %v140
    %142 = vdwg.mxu0
    %v143 = vtanh.pop %v97
    %v144 = vtanh.pop %v111
    %v145 = vtanh.pop %v125
    %v146 = vtanh.pop %v139
    %v147 = vtanh.pop %v99
    %v148 = vtanh.pop %v113
    %v149 = vtanh.pop %v127
    %v150 = vtanh.pop %v141
    %v151 = vpack.c.bf16 %v147, %v143
    %v152 = vpack.c.bf16 %v148, %v144
    %v153 = vpack.c.bf16 %v149, %v145
    %v154 = vpack.c.bf16 %v150, %v146
    %v155 = vld [vmem:[%s3] sm:$0xff]
    %v156 = vld [vmem:[%s3 + $0x8] sm:$0xff]
    %v157 = vld [vmem:[%s3 + $0x10] sm:$0xff]
    %v158 = vld [vmem:[%s3 + $0x18] sm:$0xff]
    %v159 = vld [vmem:[%s3 + $0x20] sm:$0xff]
    %v160 = vld [vmem:[%s3 + $0x28] sm:$0xff]
    %v161 = vld [vmem:[%s3 + $0x30] sm:$0xff]
    %v162 = vld [vmem:[%s3 + $0x38] sm:$0xff]
    %v163 = vld [vmem:[%s3 + $0x40] sm:$0xff]
    %v164 = vld [vmem:[%s3 + $0x48] sm:$0xff]
    %v165 = vld [vmem:[%s3 + $0x50] sm:$0xff]
    %v166 = vld [vmem:[%s3 + $0x58] sm:$0xff]
    %v167 = vld [vmem:[%s3 + $0x60] sm:$0xff]
    %v168 = vld [vmem:[%s3 + $0x68] sm:$0xff]
    %v169 = vld [vmem:[%s3 + $0x70] sm:$0xff]
    %v170 = vld [vmem:[%s3 + $0x78] sm:$0xff]
    %v171 = vld [vmem:[%s3 + $0x80] sm:$0xff]
    %v172 = vld [vmem:[%s3 + $0x88] sm:$0xff]
    %v173 = vld [vmem:[%s3 + $0x90] sm:$0xff]
    %v174 = vld [vmem:[%s3 + $0x98] sm:$0xff]
    %v175 = vld [vmem:[%s3 + $0xa0] sm:$0xff]
    %v176 = vld [vmem:[%s3 + $0xa8] sm:$0xff]
    %v177 = vld [vmem:[%s3 + $0xb0] sm:$0xff]
    %v178 = vld [vmem:[%s3 + $0xb8] sm:$0xff]
    %v179 = vld [vmem:[%s3 + $0xc0] sm:$0xff]
    %v180 = vld [vmem:[%s3 + $0xc8] sm:$0xff]
    %v181 = vld [vmem:[%s3 + $0xd0] sm:$0xff]
    %v182 = vld [vmem:[%s3 + $0xd8] sm:$0xff]
    %v183 = vld [vmem:[%s3 + $0xe0] sm:$0xff]
    %v184 = vld [vmem:[%s3 + $0xe8] sm:$0xff]
    %v185 = vld [vmem:[%s3 + $0xf0] sm:$0xff]
    %v186 = vld [vmem:[%s3 + $0xf8] sm:$0xff]
    %v187 = vld [vmem:[%s3 + $0x100] sm:$0xff]
    %v188 = vld [vmem:[%s3 + $0x108] sm:$0xff]
    %v189 = vld [vmem:[%s3 + $0x110] sm:$0xff]
    %v190 = vld [vmem:[%s3 + $0x118] sm:$0xff]
    %v191 = vld [vmem:[%s3 + $0x120] sm:$0xff]
    %v192 = vld [vmem:[%s3 + $0x128] sm:$0xff]
    %v193 = vld [vmem:[%s3 + $0x130] sm:$0xff]
    %v194 = vld [vmem:[%s3 + $0x138] sm:$0xff]
    %v195 = vld [vmem:[%s3 + $0x140] sm:$0xff]
    %v196 = vld [vmem:[%s3 + $0x148] sm:$0xff]
    %v197 = vld [vmem:[%s3 + $0x150] sm:$0xff]
    %v198 = vld [vmem:[%s3 + $0x158] sm:$0xff]
    %v199 = vld [vmem:[%s3 + $0x160] sm:$0xff]
    %v200 = vld [vmem:[%s3 + $0x168] sm:$0xff]
    %v201 = vld [vmem:[%s3 + $0x170] sm:$0xff]
    %v202 = vld [vmem:[%s3 + $0x178] sm:$0xff]
    %v203 = vld [vmem:[%s3 + $0x180] sm:$0xff]
    %v204 = vld [vmem:[%s3 + $0x188] sm:$0xff]
    %v205 = vld [vmem:[%s3 + $0x190] sm:$0xff]
    %v206 = vld [vmem:[%s3 + $0x198] sm:$0xff]
    %v207 = vld [vmem:[%s3 + $0x1a0] sm:$0xff]
    %v208 = vld [vmem:[%s3 + $0x1a8] sm:$0xff]
    %v209 = vld [vmem:[%s3 + $0x1b0] sm:$0xff]
    %v210 = vld [vmem:[%s3 + $0x1b8] sm:$0xff]
    %v211 = vld [vmem:[%s3 + $0x1c0] sm:$0xff]
    %v212 = vld [vmem:[%s3 + $0x1c8] sm:$0xff]
    %v213 = vld [vmem:[%s3 + $0x1d0] sm:$0xff]
    %v214 = vld [vmem:[%s3 + $0x1d8] sm:$0xff]
    %v215 = vld [vmem:[%s3 + $0x1e0] sm:$0xff]
    %v216 = vld [vmem:[%s3 + $0x1e8] sm:$0xff]
    %v217 = vld [vmem:[%s3 + $0x1f0] sm:$0xff]
    %v218 = vld [vmem:[%s3 + $0x1f8] sm:$0xff]
    %v219 = vld [vmem:[%s4] sm:$0x3]
    %v221 = vperm.slane %v219, 0
    %v222 = vperm.slane %v219, 1
    %v289 = vunpack.c.l.b16 %v155
    %v290 = vunpack.c.h.b16 %v155
    %v291 = vunpack.c.l.b16 %v156
    %v292 = vunpack.c.h.b16 %v156
    %v293 = vunpack.c.l.b16 %v157
    %v294 = vunpack.c.h.b16 %v157
    %v295 = vunpack.c.l.b16 %v158
    %v296 = vunpack.c.h.b16 %v158
    %v297 = vunpack.c.l.b16 %v159
    %v298 = vunpack.c.h.b16 %v159
    %v299 = vunpack.c.l.b16 %v160
    %v300 = vunpack.c.h.b16 %v160
    %v301 = vunpack.c.l.b16 %v161
    %v302 = vunpack.c.h.b16 %v161
    %v303 = vunpack.c.l.b16 %v162
    %v304 = vunpack.c.h.b16 %v162
    %v305 = vunpack.c.l.b16 %v163
    %v306 = vunpack.c.h.b16 %v163
    %v307 = vunpack.c.l.b16 %v164
    %v308 = vunpack.c.h.b16 %v164
    %v309 = vunpack.c.l.b16 %v165
    %v310 = vunpack.c.h.b16 %v165
    %v311 = vunpack.c.l.b16 %v166
    %v312 = vunpack.c.h.b16 %v166
    %v313 = vunpack.c.l.b16 %v167
    %v314 = vunpack.c.h.b16 %v167
    %v315 = vunpack.c.l.b16 %v168
    %v316 = vunpack.c.h.b16 %v168
    %v317 = vunpack.c.l.b16 %v169
    %v318 = vunpack.c.h.b16 %v169
    %v319 = vunpack.c.l.b16 %v170
    %v320 = vunpack.c.h.b16 %v170
    %v321 = vunpack.c.l.b16 %v171
    %v322 = vunpack.c.h.b16 %v171
    %v323 = vunpack.c.l.b16 %v172
    %v324 = vunpack.c.h.b16 %v172
    %v325 = vunpack.c.l.b16 %v173
    %v326 = vunpack.c.h.b16 %v173
    %v327 = vunpack.c.l.b16 %v174
    %v328 = vunpack.c.h.b16 %v174
    %v329 = vunpack.c.l.b16 %v175
    %v330 = vunpack.c.h.b16 %v175
    %v331 = vunpack.c.l.b16 %v176
    %v332 = vunpack.c.h.b16 %v176
    %v333 = vunpack.c.l.b16 %v177
    %v334 = vunpack.c.h.b16 %v177
    %v335 = vunpack.c.l.b16 %v178
    %v336 = vunpack.c.h.b16 %v178
    %v337 = vunpack.c.l.b16 %v179
    %v338 = vunpack.c.h.b16 %v179
    %v339 = vunpack.c.l.b16 %v180
    %v340 = vunpack.c.h.b16 %v180
    %v341 = vunpack.c.l.b16 %v181
    %v342 = vunpack.c.h.b16 %v181
    %v343 = vunpack.c.l.b16 %v182
    %v344 = vunpack.c.h.b16 %v182
    %v345 = vunpack.c.l.b16 %v183
    %v346 = vunpack.c.h.b16 %v183
    %v347 = vunpack.c.l.b16 %v184
    %v348 = vunpack.c.h.b16 %v184
    %v349 = vunpack.c.l.b16 %v185
    %v350 = vunpack.c.h.b16 %v185
    %v351 = vunpack.c.l.b16 %v186
    %v352 = vunpack.c.h.b16 %v186
    %v353 = vunpack.c.l.b16 %v187
    %v354 = vunpack.c.h.b16 %v187
    %v355 = vunpack.c.l.b16 %v188
    %v356 = vunpack.c.h.b16 %v188
    %v357 = vunpack.c.l.b16 %v189
    %v358 = vunpack.c.h.b16 %v189
    %v359 = vunpack.c.l.b16 %v190
    %v360 = vunpack.c.h.b16 %v190
    %v361 = vunpack.c.l.b16 %v191
    %v362 = vunpack.c.h.b16 %v191
    %v363 = vunpack.c.l.b16 %v192
    %v364 = vunpack.c.h.b16 %v192
    %v365 = vunpack.c.l.b16 %v193
    %v366 = vunpack.c.h.b16 %v193
    %v367 = vunpack.c.l.b16 %v194
    %v368 = vunpack.c.h.b16 %v194
    %v369 = vunpack.c.l.b16 %v195
    %v370 = vunpack.c.h.b16 %v195
    %v371 = vunpack.c.l.b16 %v196
    %v372 = vunpack.c.h.b16 %v196
    %v373 = vunpack.c.l.b16 %v197
    %v374 = vunpack.c.h.b16 %v197
    %v375 = vunpack.c.l.b16 %v198
    %v376 = vunpack.c.h.b16 %v198
    %v377 = vunpack.c.l.b16 %v199
    %v378 = vunpack.c.h.b16 %v199
    %v379 = vunpack.c.l.b16 %v200
    %v380 = vunpack.c.h.b16 %v200
    %v381 = vunpack.c.l.b16 %v201
    %v382 = vunpack.c.h.b16 %v201
    %v383 = vunpack.c.l.b16 %v202
    %v384 = vunpack.c.h.b16 %v202
    %v385 = vunpack.c.l.b16 %v203
    %v386 = vunpack.c.h.b16 %v203
    %v387 = vunpack.c.l.b16 %v204
    %v388 = vunpack.c.h.b16 %v204
    %v389 = vunpack.c.l.b16 %v205
    %v390 = vunpack.c.h.b16 %v205
    %v391 = vunpack.c.l.b16 %v206
    %v392 = vunpack.c.h.b16 %v206
    %v393 = vunpack.c.l.b16 %v207
    %v394 = vunpack.c.h.b16 %v207
    %v395 = vunpack.c.l.b16 %v208
    %v396 = vunpack.c.h.b16 %v208
    %v397 = vunpack.c.l.b16 %v209
    %v398 = vunpack.c.h.b16 %v209
    %v399 = vunpack.c.l.b16 %v210
    %v400 = vunpack.c.h.b16 %v210
    %v401 = vunpack.c.l.b16 %v211
    %v402 = vunpack.c.h.b16 %v211
    %v403 = vunpack.c.l.b16 %v212
    %v404 = vunpack.c.h.b16 %v212
    %v405 = vunpack.c.l.b16 %v213
    %v406 = vunpack.c.h.b16 %v213
    %v407 = vunpack.c.l.b16 %v214
    %v408 = vunpack.c.h.b16 %v214
    %v409 = vunpack.c.l.b16 %v215
    %v410 = vunpack.c.h.b16 %v215
    %v411 = vunpack.c.l.b16 %v216
    %v412 = vunpack.c.h.b16 %v216
    %v413 = vunpack.c.l.b16 %v217
    %v414 = vunpack.c.h.b16 %v217
    %v415 = vunpack.c.l.b16 %v218
    %v416 = vunpack.c.h.b16 %v218
    %v417 = vpack.c.b16 %v291, %v289
    %v418 = vpack.c.b16 %v292, %v290
    %v419 = vpack.c.b16 %v295, %v293
    %v420 = vpack.c.b16 %v296, %v294
    %v421 = vpack.c.b16 %v299, %v297
    %v422 = vpack.c.b16 %v300, %v298
    %v423 = vpack.c.b16 %v303, %v301
    %v424 = vpack.c.b16 %v304, %v302
    %v425 = vpack.c.b16 %v307, %v305
    %v426 = vpack.c.b16 %v308, %v306
    %v427 = vpack.c.b16 %v311, %v309
    %v428 = vpack.c.b16 %v312, %v310
    %v429 = vpack.c.b16 %v315, %v313
    %v430 = vpack.c.b16 %v316, %v314
    %v431 = vpack.c.b16 %v319, %v317
    %v432 = vpack.c.b16 %v320, %v318
    %v433 = vpack.c.b16 %v323, %v321
    %v434 = vpack.c.b16 %v324, %v322
    %v435 = vpack.c.b16 %v327, %v325
    %v436 = vpack.c.b16 %v328, %v326
    %v437 = vpack.c.b16 %v331, %v329
    %v438 = vpack.c.b16 %v332, %v330
    %v439 = vpack.c.b16 %v335, %v333
    %v440 = vpack.c.b16 %v336, %v334
    %v441 = vpack.c.b16 %v339, %v337
    %v442 = vpack.c.b16 %v340, %v338
    %v443 = vpack.c.b16 %v343, %v341
    %v444 = vpack.c.b16 %v344, %v342
    %v445 = vpack.c.b16 %v347, %v345
    %v446 = vpack.c.b16 %v348, %v346
    %v447 = vpack.c.b16 %v351, %v349
    %v448 = vpack.c.b16 %v352, %v350
    %v449 = vpack.c.b16 %v355, %v353
    %v450 = vpack.c.b16 %v356, %v354
    %v451 = vpack.c.b16 %v359, %v357
    %v452 = vpack.c.b16 %v360, %v358
    %v453 = vpack.c.b16 %v363, %v361
    %v454 = vpack.c.b16 %v364, %v362
    %v455 = vpack.c.b16 %v367, %v365
    %v456 = vpack.c.b16 %v368, %v366
    %v457 = vpack.c.b16 %v371, %v369
    %v458 = vpack.c.b16 %v372, %v370
    %v459 = vpack.c.b16 %v375, %v373
    %v460 = vpack.c.b16 %v376, %v374
    %v461 = vpack.c.b16 %v379, %v377
    %v462 = vpack.c.b16 %v380, %v378
    %v463 = vpack.c.b16 %v383, %v381
    %v464 = vpack.c.b16 %v384, %v382
    %v465 = vpack.c.b16 %v387, %v385
    %v466 = vpack.c.b16 %v388, %v386
    %v467 = vpack.c.b16 %v391, %v389
    %v468 = vpack.c.b16 %v392, %v390
    %v469 = vpack.c.b16 %v395, %v393
    %v470 = vpack.c.b16 %v396, %v394
    %v471 = vpack.c.b16 %v399, %v397
    %v472 = vpack.c.b16 %v400, %v398
    %v473 = vpack.c.b16 %v403, %v401
    %v474 = vpack.c.b16 %v404, %v402
    %v475 = vpack.c.b16 %v407, %v405
    %v476 = vpack.c.b16 %v408, %v406
    %v477 = vpack.c.b16 %v411, %v409
    %v478 = vpack.c.b16 %v412, %v410
    %v479 = vpack.c.b16 %v415, %v413
    %v480 = vpack.c.b16 %v416, %v414
    %545 = vmatpush.bf16.msra.mxu0 %v431
    %546 = vmatpush.bf16.msra.mxu0 %v429
    %547 = vmatpush.bf16.msra.mxu0 %v427
    %548 = vmatpush.bf16.msra.mxu0 %v425
    %549 = vmatpush.bf16.msra.mxu0 %v423
    %550 = vmatpush.bf16.msra.mxu0 %v421
    %551 = vmatpush.bf16.msra.mxu0 %v419
    %552 = vmatpush.bf16.msra.mxu0 %v417
    %553 = vmatmul.bf16.gmra.mxu0 %v151
    %v554 = vpop.f32.mrf.mxu0
    %v555 = vadd.f32 %v221, %v554
    %v556 = vpop.f32.mrf.mxu0
    %v557 = vadd.f32 %v221, %v556
    %558 = vdwg.mxu0
    %559 = vmatpush.bf16.msra.mxu0 %v447
    %560 = vmatpush.bf16.msra.mxu0 %v445
    %561 = vmatpush.bf16.msra.mxu0 %v443
    %562 = vmatpush.bf16.msra.mxu0 %v441
    %563 = vmatpush.bf16.msra.mxu0 %v439
    %564 = vmatpush.bf16.msra.mxu0 %v437
    %565 = vmatpush.bf16.msra.mxu0 %v435
    %566 = vmatpush.bf16.msra.mxu0 %v433
    %567 = vmatmul.bf16.gmra.mxu0 %v152
    %v568 = vpop.f32.mrf.mxu0
    %v569 = vadd.f32 %v555, %v568
    %v570 = vpop.f32.mrf.mxu0
    %v571 = vadd.f32 %v557, %v570
    %572 = vdwg.mxu0
    %573 = vmatpush.bf16.msra.mxu0 %v463
    %574 = vmatpush.bf16.msra.mxu0 %v461
    %575 = vmatpush.bf16.msra.mxu0 %v459
    %576 = vmatpush.bf16.msra.mxu0 %v457
    %577 = vmatpush.bf16.msra.mxu0 %v455
    %578 = vmatpush.bf16.msra.mxu0 %v453
    %579 = vmatpush.bf16.msra.mxu0 %v451
    %580 = vmatpush.bf16.msra.mxu0 %v449
    %581 = vmatmul.bf16.gmra.mxu0 %v153
    %v582 = vpop.f32.mrf.mxu0
    %v583 = vadd.f32 %v569, %v582
    %v584 = vpop.f32.mrf.mxu0
    %v585 = vadd.f32 %v571, %v584
    %586 = vdwg.mxu0
    %587 = vmatpush.bf16.msra.mxu0 %v479
    %588 = vmatpush.bf16.msra.mxu0 %v477
    %589 = vmatpush.bf16.msra.mxu0 %v475
    %590 = vmatpush.bf16.msra.mxu0 %v473
    %591 = vmatpush.bf16.msra.mxu0 %v471
    %592 = vmatpush.bf16.msra.mxu0 %v469
    %593 = vmatpush.bf16.msra.mxu0 %v467
    %594 = vmatpush.bf16.msra.mxu0 %v465
    %595 = vmatmul.bf16.gmra.mxu0 %v154
    %v596 = vpop.f32.mrf.mxu0
    %v597 = vadd.f32 %v583, %v596
    %v598 = vpop.f32.mrf.mxu0
    %v599 = vadd.f32 %v585, %v598
    %600 = vdwg.mxu0
    %601 = vmatpush.bf16.msra.mxu0 %v432
    %602 = vmatpush.bf16.msra.mxu0 %v430
    %603 = vmatpush.bf16.msra.mxu0 %v428
    %604 = vmatpush.bf16.msra.mxu0 %v426
    %605 = vmatpush.bf16.msra.mxu0 %v424
    %606 = vmatpush.bf16.msra.mxu0 %v422
    %607 = vmatpush.bf16.msra.mxu0 %v420
    %608 = vmatpush.bf16.msra.mxu0 %v418
    %609 = vmatmul.bf16.gmra.mxu0 %v151
    %v610 = vpop.f32.mrf.mxu0
    %v611 = vadd.f32 %v222, %v610
    %v612 = vpop.f32.mrf.mxu0
    %v613 = vadd.f32 %v222, %v612
    %614 = vdwg.mxu0
    %615 = vmatpush.bf16.msra.mxu0 %v448
    %616 = vmatpush.bf16.msra.mxu0 %v446
    %617 = vmatpush.bf16.msra.mxu0 %v444
    %618 = vmatpush.bf16.msra.mxu0 %v442
    %619 = vmatpush.bf16.msra.mxu0 %v440
    %620 = vmatpush.bf16.msra.mxu0 %v438
    %621 = vmatpush.bf16.msra.mxu0 %v436
    %622 = vmatpush.bf16.msra.mxu0 %v434
    %623 = vmatmul.bf16.gmra.mxu0 %v152
    %v624 = vpop.f32.mrf.mxu0
    %v625 = vadd.f32 %v611, %v624
    %v626 = vpop.f32.mrf.mxu0
    %v627 = vadd.f32 %v613, %v626
    %628 = vdwg.mxu0
    %629 = vmatpush.bf16.msra.mxu0 %v464
    %630 = vmatpush.bf16.msra.mxu0 %v462
    %631 = vmatpush.bf16.msra.mxu0 %v460
    %632 = vmatpush.bf16.msra.mxu0 %v458
    %633 = vmatpush.bf16.msra.mxu0 %v456
    %634 = vmatpush.bf16.msra.mxu0 %v454
    %635 = vmatpush.bf16.msra.mxu0 %v452
    %636 = vmatpush.bf16.msra.mxu0 %v450
    %637 = vmatmul.bf16.gmra.mxu0 %v153
    %v638 = vpop.f32.mrf.mxu0
    %v639 = vadd.f32 %v625, %v638
    %v640 = vpop.f32.mrf.mxu0
    %v641 = vadd.f32 %v627, %v640
    %642 = vdwg.mxu0
    %643 = vmatpush.bf16.msra.mxu0 %v480
    %644 = vmatpush.bf16.msra.mxu0 %v478
    %645 = vmatpush.bf16.msra.mxu0 %v476
    %646 = vmatpush.bf16.msra.mxu0 %v474
    %647 = vmatpush.bf16.msra.mxu0 %v472
    %648 = vmatpush.bf16.msra.mxu0 %v470
    %649 = vmatpush.bf16.msra.mxu0 %v468
    %650 = vmatpush.bf16.msra.mxu0 %v466
    %651 = vmatmul.bf16.gmra.mxu0 %v154
    %v652 = vpop.f32.mrf.mxu0
    %v653 = vadd.f32 %v639, %v652
    %v654 = vpop.f32.mrf.mxu0
    %v655 = vadd.f32 %v641, %v654
    %656 = vdwg.mxu0
    %v657 = vtanh.pop %v597
    %v658 = vtanh.pop %v653
    %v659 = vtanh.pop %v599
    %v660 = vtanh.pop %v655
    %661 = vst [vmem:[#allocation2] sm:$0xff] %v657
    %662 = vst [vmem:[#allocation2 + $0x8] sm:$0xff] %v658
    %663 = vst [vmem:[#allocation2 + $0x10] sm:$0xff] %v659
    %664 = vst [vmem:[#allocation2 + $0x18] sm:$0xff] %v660
    // Predicated region
    $region22: #{feature_extractor_forward.1} parent=1 // pred_check
      _
    $region23: #{feature_extractor_forward.1} parent=1 // pred_check_branch
      %666 = sbr.rel (0) target = $region25
    $region24: #{feature_extractor_forward.1} parent=1 // pred_region
      %668 = vsyncadd [#allocation3], 0
      %s669 = sshll.u32 [#allocation2], 4
      %s670 = int_to_ptr.vmem [resolvable:$true] %s669
      %s671 = sshll.u32 %s5, 4
      %s672 = int_to_ptr.hbm [resolvable:$true] %s671
      %677 = dma.vmem_to_hbm [thread:$0]  %s670, 512, %s672, [#allocation3], 256, 256, 16
    $region25: #{feature_extractor_forward.1} parent=1 // pred_fallthru
      _
    // Predicated region
    $region26: #{feature_extractor_forward.1} parent=1 // pred_check
      _
    $region27: #{feature_extractor_forward.1} parent=1 // pred_check_branch
      %679 = sbr.rel (0) target = $region29
    $region28: #{feature_extractor_forward.1} parent=1 // pred_region
      %681 = dma.done [#allocation3], 512
    $region29: #{feature_extractor_forward.1} parent=1 // pred_fallthru
      _
    %682 = vsyncpa [#allocation3], 1

</llo_original>
